<compile_context>
chip_gen: v6e
topology: v6e:2x2x1
jax: 0.10.0
libtpu: 0.0.40
codegen_flags: <defaults>
</compile_context>

<pallas_src>
import jax
import jax.numpy as jnp
from jax import lax
from jax.experimental import pallas as pl
from jax.experimental.pallas import tpu as pltpu


def _round_up(x, m):
    return m * ((x + m - 1) // m)


def mlp_kernel(x_ref, w1_ref, w2_ref, w3_ref, w4_ref, b_ref, o_ref):
    # x_ref : (TB, in)  f32  -- natural layout (batch on sublanes here)
    # w1_ref: (128, in) f32, w2_ref: (64, 128) bf16, w3_ref: (32, 64) bf16
    # w4_ref: (32, 1)   f32, b_ref: (225, 1) f32,   o_ref: (1, TB) f32
    x = x_ref[...]

    # Layer 1: Linear(in, 128) in full f32.  Contract x's last dim so the
    # result is (128, TB): batch moves onto the lane axis for the rest of
    # the kernel (no explicit in-kernel transpose needed).
    h = lax.dot_general(w1_ref[...], x, (((1,), (1,)), ((), ())),
                        preferred_element_type=jnp.float32)
    # Bias + ReLU + bf16 downcast fused, so any spilled intermediate is bf16.
    h = jnp.maximum(h + b_ref[pl.ds(0, 128), :], 0.0).astype(jnp.bfloat16)
    # Dropout(0.2): identity at inference.

    # Layer 2: Linear(128, 64), bf16 operands, f32 MXU accumulation.
    h = jnp.dot(w2_ref[...], h, preferred_element_type=jnp.float32)
    h = jnp.maximum(h + b_ref[pl.ds(128, 64), :], 0.0).astype(jnp.bfloat16)
    # Dropout(0.2): identity at inference.

    # Layer 3: Linear(64, 32), bf16 operands, f32 MXU accumulation.
    h = jnp.dot(w3_ref[...], h, preferred_element_type=jnp.float32)
    h = jnp.maximum(h + b_ref[pl.ds(192, 32), :], 0.0)

    # Layer 4: Linear(32, 1) off the MXU: VPU multiply + sublane reduction.
    out = jnp.sum(h * w4_ref[...], axis=0, keepdims=True)      # (1, TB) f32
    out = out + b_ref[pl.ds(224, 1), :]
    o_ref[...] = out.astype(o_ref.dtype)


def delivery_time_forward(x, params, *, tb=4096):
    """x: (B, input_size) f32; params: dict of (in,out) weights and (1,out) biases."""
    B, in_size = x.shape

    # ---- batch tile selection -------------------------------------------
    B_lanes = _round_up(B, 128)
    if B_lanes > 128:
        # Force at least two tiles so ("parallel",) lands on both v7x cores.
        TB = min(max(tb, 128), _round_up(B_lanes // 2, 128))
    else:
        TB = 128
    num_tiles = pl.cdiv(B, TB)

    # ---- resident operands (tiny one-time host prep) ----------------------
    w1t = params["w1"].T.astype(jnp.float32)      # (128, in)  f32 (layer-1 precision)
    w2t = params["w2"].T.astype(jnp.bfloat16)     # (64, 128)
    w3t = params["w3"].T.astype(jnp.bfloat16)     # (32, 64)
    w4c = params["w4"].astype(jnp.float32)        # (32, 1)    VPU epilogue
    bcat = jnp.concatenate(
        [params["b1"].reshape(128, 1),
         params["b2"].reshape(64, 1),
         params["b3"].reshape(32, 1),
         params["b4"].reshape(1, 1)], axis=0).astype(jnp.float32)   # (225, 1)

    def resident(arr):
        # Constant index_map: block never changes -> stays VMEM-resident.
        return pl.BlockSpec(arr.shape, lambda i: (0, 0))

    # ---- VMEM budget: double-buffered x/out + f32/bf16 intermediates ------
    per_lane = (2 * in_size * 4          # x tile, double-buffered, f32
                + 128 * (4 + 2)          # h1 f32 + bf16
                + 64 * (4 + 2)           # h2 f32 + bf16
                + 32 * 4                 # h3 f32
                + 2 * 4)                 # out, double-buffered
    vmem_bytes = int(min(max(2 * TB * per_lane, 32 << 20), 64 << 20))

    out = pl.pallas_call(
        mlp_kernel,
        out_shape=jax.ShapeDtypeStruct((1, B), jnp.float32),
        grid=(num_tiles,),
        in_specs=[
            pl.BlockSpec((TB, in_size), lambda i: (i, 0)),   # x tile (pipelined)
            resident(w1t), resident(w2t), resident(w3t),
            resident(w4c), resident(bcat),
        ],
        out_specs=pl.BlockSpec((1, TB), lambda i: (0, i)),   # lane-dense output
        compiler_params=pltpu.CompilerParams(
            dimension_semantics=("parallel",),
            vmem_limit_bytes=vmem_bytes),
    )(x.astype(jnp.float32), w1t, w2t, w3t, w4c, bcat)

    return out.T   # (B, 1) f32


def init_params(key, input_size):
    """Deterministic synthetic init mimicking nn.Linear (uniform +/- 1/sqrt(fan_in))."""
    dims = [(input_size, 128), (128, 64), (64, 32), (32, 1)]
    params = {}
    keys = jax.random.split(key, 2 * len(dims))
    for idx, (fan_in, fan_out) in enumerate(dims):
        bound = 1.0 / (fan_in ** 0.5)
        w = jax.random.uniform(keys[2 * idx], (fan_in, fan_out),
                               minval=-bound, maxval=bound, dtype=jnp.float32)
        b = jax.random.uniform(keys[2 * idx + 1], (1, fan_out),
                               minval=-bound, maxval=bound, dtype=jnp.float32)
        params[f"w{idx + 1}"] = w
        params[f"b{idx + 1}"] = b
    return params


def reference_forward(x, params):
    """Pure-f32 reference (matches the PyTorch module in eval mode)."""
    h = jnp.maximum(x @ params["w1"] + params["b1"], 0.0)
    h = jnp.maximum(h @ params["w2"] + params["b2"], 0.0)
    h = jnp.maximum(h @ params["w3"] + params["b3"], 0.0)
    return h @ params["w4"] + params["b4"]


if __name__ == "__main__":
    key = jax.random.PRNGKey(0)
    k_x, k_p = jax.random.split(key)

    batch = 8
    input_size = 32   # number of delivery features
    x = jax.random.normal(k_x, (batch, input_size), dtype=jnp.float32)
    params = init_params(k_p, input_size)

    out = delivery_time_forward(x, params)
    out = jax.block_until_ready(out)

    assert out.shape == (batch, 1)
    ref = reference_forward(x, params)
    assert jnp.allclose(out, ref, atol=5e-2, rtol=5e-2), \
        "mismatch vs f32 reference"

    print("KERNEL_OK")
</pallas_src>

<mosaic_0001>
module attributes {stable_mosaic.version = 11 : i64} {
  func.func @mlp_kernel(%arg0: i32, %arg1: memref<128x32xf32, #tpu.memory_space<vmem>>, %arg2: memref<128x32xf32, #tpu.memory_space<vmem>>, %arg3: memref<64x128xbf16, #tpu.memory_space<vmem>>, %arg4: memref<32x64xbf16, #tpu.memory_space<vmem>>, %arg5: memref<32x1xf32, #tpu.memory_space<vmem>>, %arg6: memref<225x1xf32, #tpu.memory_space<vmem>>, %arg7: memref<1x128xf32, #tpu.memory_space<vmem>>) attributes {dimension_semantics = [#tpu.dimension_semantics<parallel>], iteration_bounds = array<i64: 1>, scalar_prefetch = 0 : i64, scratch_operands = 0 : i64, tpu.core_type = #tpu.core_type<tc>, window_params = [{transform_indices = @transform_0, window_bounds = array<i64: 128, 32>}, {pipeline_mode = #tpu.pipeline_mode<synchronous>, transform_indices = @transform_1, window_bounds = array<i64: 128, 32>}, {pipeline_mode = #tpu.pipeline_mode<synchronous>, transform_indices = @transform_2, window_bounds = array<i64: 64, 128>}, {pipeline_mode = #tpu.pipeline_mode<synchronous>, transform_indices = @transform_3, window_bounds = array<i64: 32, 64>}, {pipeline_mode = #tpu.pipeline_mode<synchronous>, transform_indices = @transform_4, window_bounds = array<i64: 32, 1>}, {pipeline_mode = #tpu.pipeline_mode<synchronous>, transform_indices = @transform_5, window_bounds = array<i64: 225, 1>}, {transform_indices = @transform_6, window_bounds = array<i64: 1, 128>}]} {
    %c0 = arith.constant 0 : index
    %c0_0 = arith.constant 0 : index
    %0 = vector.load %arg1[%c0, %c0_0] : memref<128x32xf32, #tpu.memory_space<vmem>>, vector<128x32xf32>
    %c0_1 = arith.constant 0 : index
    %c0_2 = arith.constant 0 : index
    %1 = vector.load %arg2[%c0_1, %c0_2] : memref<128x32xf32, #tpu.memory_space<vmem>>, vector<128x32xf32>
    %cst = arith.constant dense<0.000000e+00> : vector<128x128xf32>
    %2 = tpu.matmul %1, %0, %cst {dimension_numbers = #tpu.dot_dimension_numbers<[1], [1], [0], [0], [0, 0, 1, 0], [], []>} : vector<128x32xf32>, vector<128x32xf32>, vector<128x128xf32> -> vector<128x128xf32>
    %c0_3 = arith.constant 0 : index
    %c0_4 = arith.constant 0 : index
    %3 = vector.load %arg6[%c0_3, %c0_4] : memref<225x1xf32, #tpu.memory_space<vmem>>, vector<128x1xf32>
    %4 = vector.broadcast %3 : vector<128x1xf32> to vector<128x128xf32>
    %5 = arith.addf %2, %4 : vector<128x128xf32>
    %cst_5 = arith.constant 0.000000e+00 : f32
    %6 = vector.broadcast %cst_5 : f32 to vector<128x128xf32>
    %7 = arith.maximumf %5, %6 : vector<128x128xf32>
    %8 = arith.truncf %7 : vector<128x128xf32> to vector<128x128xbf16>
    %c0_6 = arith.constant 0 : index
    %c0_7 = arith.constant 0 : index
    %9 = vector.load %arg3[%c0_6, %c0_7] : memref<64x128xbf16, #tpu.memory_space<vmem>>, vector<64x128xbf16>
    %cst_8 = arith.constant dense<0.000000e+00> : vector<64x128xf32>
    %10 = tpu.matmul %9, %8, %cst_8 {dimension_numbers = #tpu.dot_dimension_numbers<[1], [0], [0], [1], [0, 0, 1, 1], [], []>} : vector<64x128xbf16>, vector<128x128xbf16>, vector<64x128xf32> -> vector<64x128xf32>
    %c128 = arith.constant 128 : index
    %c0_9 = arith.constant 0 : index
    %11 = vector.load %arg6[%c128, %c0_9] : memref<225x1xf32, #tpu.memory_space<vmem>>, vector<64x1xf32>
    %12 = vector.broadcast %11 : vector<64x1xf32> to vector<64x128xf32>
    %13 = arith.addf %10, %12 : vector<64x128xf32>
    %cst_10 = arith.constant 0.000000e+00 : f32
    %14 = vector.broadcast %cst_10 : f32 to vector<64x128xf32>
    %15 = arith.maximumf %13, %14 : vector<64x128xf32>
    %16 = arith.truncf %15 : vector<64x128xf32> to vector<64x128xbf16>
    %c0_11 = arith.constant 0 : index
    %c0_12 = arith.constant 0 : index
    %17 = vector.load %arg4[%c0_11, %c0_12] : memref<32x64xbf16, #tpu.memory_space<vmem>>, vector<32x64xbf16>
    %cst_13 = arith.constant dense<0.000000e+00> : vector<32x128xf32>
    %18 = tpu.matmul %17, %16, %cst_13 {dimension_numbers = #tpu.dot_dimension_numbers<[1], [0], [0], [1], [0, 0, 1, 1], [], []>} : vector<32x64xbf16>, vector<64x128xbf16>, vector<32x128xf32> -> vector<32x128xf32>
    %c192 = arith.constant 192 : index
    %c0_14 = arith.constant 0 : index
    %19 = vector.load %arg6[%c192, %c0_14] : memref<225x1xf32, #tpu.memory_space<vmem>>, vector<32x1xf32>
    %20 = vector.broadcast %19 : vector<32x1xf32> to vector<32x128xf32>
    %21 = arith.addf %18, %20 : vector<32x128xf32>
    %cst_15 = arith.constant 0.000000e+00 : f32
    %22 = vector.broadcast %cst_15 : f32 to vector<32x128xf32>
    %23 = arith.maximumf %21, %22 : vector<32x128xf32>
    %c0_16 = arith.constant 0 : index
    %c0_17 = arith.constant 0 : index
    %24 = vector.load %arg5[%c0_16, %c0_17] : memref<32x1xf32, #tpu.memory_space<vmem>>, vector<32x1xf32>
    %25 = vector.broadcast %24 : vector<32x1xf32> to vector<32x128xf32>
    %26 = arith.mulf %23, %25 : vector<32x128xf32>
    %cst_18 = arith.constant dense<0.000000e+00> : vector<128xf32>
    %27 = vector.multi_reduction <add>, %26, %cst_18 [0] : vector<32x128xf32> to vector<128xf32>
    %28 = vector.shape_cast %27 : vector<128xf32> to vector<1x128xf32>
    %c224 = arith.constant 224 : index
    %c0_19 = arith.constant 0 : index
    %29 = vector.load %arg6[%c224, %c0_19] : memref<225x1xf32, #tpu.memory_space<vmem>>, vector<1x1xf32>
    %30 = vector.broadcast %29 : vector<1x1xf32> to vector<1x128xf32>
    %31 = arith.addf %28, %30 : vector<1x128xf32>
    %c0_20 = arith.constant 0 : index
    %c0_21 = arith.constant 0 : index
    %32 = vector.load %arg7[%c0_20, %c0_21] : memref<1x128xf32, #tpu.memory_space<vmem>>, vector<1x128xf32>
    tpu.vector_store %arg7[%c0_20, %c0_21], %31 {strides = array<i32>} : memref<1x128xf32, #tpu.memory_space<vmem>>, vector<1x128xf32>,
    return
  }
  func.func @transform_0(%arg0: i32) -> (i32, i32) {
    %c0_i32 = arith.constant 0 : i32
    %c0_i32_0 = arith.constant 0 : i32
    return %arg0, %c0_i32 : i32, i32
  }
  func.func @transform_1(%arg0: i32) -> (i32, i32) {
    %c0_i32 = arith.constant 0 : i32
    %c0_i32_0 = arith.constant 0 : i32
    %c0_i32_1 = arith.constant 0 : i32
    return %c0_i32, %c0_i32_0 : i32, i32
  }
  func.func @transform_2(%arg0: i32) -> (i32, i32) {
    %c0_i32 = arith.constant 0 : i32
    %c0_i32_0 = arith.constant 0 : i32
    %c0_i32_1 = arith.constant 0 : i32
    return %c0_i32, %c0_i32_0 : i32, i32
  }
  func.func @transform_3(%arg0: i32) -> (i32, i32) {
    %c0_i32 = arith.constant 0 : i32
    %c0_i32_0 = arith.constant 0 : i32
    %c0_i32_1 = arith.constant 0 : i32
    return %c0_i32, %c0_i32_0 : i32, i32
  }
  func.func @transform_4(%arg0: i32) -> (i32, i32) {
    %c0_i32 = arith.constant 0 : i32
    %c0_i32_0 = arith.constant 0 : i32
    %c0_i32_1 = arith.constant 0 : i32
    return %c0_i32, %c0_i32_0 : i32, i32
  }
  func.func @transform_5(%arg0: i32) -> (i32, i32) {
    %c0_i32 = arith.constant 0 : i32
    %c0_i32_0 = arith.constant 0 : i32
    %c0_i32_1 = arith.constant 0 : i32
    return %c0_i32, %c0_i32_0 : i32, i32
  }
  func.func @transform_6(%arg0: i32) -> (i32, i32) {
    %c0_i32 = arith.constant 0 : i32
    %c0_i32_0 = arith.constant 0 : i32
    return %c0_i32, %arg0 : i32, i32
  }
}

</mosaic_0001>

<llo_original>
// kernel: tpu_custom_call.1
$region0: #{tpu_custom_call.1}
  #allocation0 [shape = 'u32[]', space=smem, size = 0x4, offset = 0x4, fixed_abs, tag = 'smem constant byte address 0x4 - core index']
  #allocation1 [shape = 'u32[144,128]{1,0:T(1,128)}', space=vmem, size = 0x12000, scoped, tag = 'internal scratch']
  %s0 = inlined_call_operand.vmem [shape: f32[8,32], index: 0, kind: input, shape index: {}]
  %s1 = inlined_call_operand.vmem [shape: f32[128,32], index: 1, kind: input, shape index: {}]
  %s2 = inlined_call_operand.vmem [shape: bf16[64,128], index: 2, kind: input, shape index: {}]
  %s3 = inlined_call_operand.vmem [shape: bf16[32,64], index: 3, kind: input, shape index: {}]
  %s4 = inlined_call_operand.vmem [shape: f32[32,1], index: 4, kind: input, shape index: {}]
  %s5 = inlined_call_operand.vmem [shape: f32[225,1], index: 5, kind: input, shape index: {}]
  %s6 = inlined_call_operand.hbm [shape: f32[1,8], index: 6, kind: output, shape index: {}]
  %s7 = sld [smem:[#allocation0]]
  $region34: #{tpu_custom_call.1} parent=0
    _
  %s9 = ssub.s32 1, %s7
  %s10 = scalar_select 0, %s9, %s7
  $region1: #{tpu_custom_call.1} parent=0
    #allocation2 [shape = 'u8[512]{0}', space=vmem, size = 0x400, scoped, tag = 'output window, operand 0, single buffered']
    #allocation3 [shape = 's32[1]{0}', space=sflag, size = 0x4, scoped, tag = 'scoped memory for tpu_custom_call.1']
    %11 = vsyncpa [#allocation3], 0
    // Predicated region
    $region2: #{tpu_custom_call.1} parent=1 // pred_check
      _
    $region3: #{tpu_custom_call.1} parent=1 // pred_check_branch
      %13 = sbr.rel (0) target = $region5
    $region4: #{tpu_custom_call.1} parent=1 // pred_region
      _
    $region5: #{tpu_custom_call.1} parent=1 // pred_fallthru
      _
    // Predicated region
    $region6: #{tpu_custom_call.1} parent=1 // pred_check
      _
    $region7: #{tpu_custom_call.1} parent=1 // pred_check_branch
      %15 = sbr.rel (0) target = $region9
    $region8: #{tpu_custom_call.1} parent=1 // pred_region
      _
    $region9: #{tpu_custom_call.1} parent=1 // pred_fallthru
      _
    // Predicated region
    $region10: #{tpu_custom_call.1} parent=1 // pred_check
      _
    $region11: #{tpu_custom_call.1} parent=1 // pred_check_branch
      %17 = sbr.rel (0) target = $region13
    $region12: #{tpu_custom_call.1} parent=1 // pred_region
      _
    $region13: #{tpu_custom_call.1} parent=1 // pred_fallthru
      _
    // Predicated region
    $region14: #{tpu_custom_call.1} parent=1 // pred_check
      _
    $region15: #{tpu_custom_call.1} parent=1 // pred_check_branch
      %19 = sbr.rel (0) target = $region17
    $region16: #{tpu_custom_call.1} parent=1 // pred_region
      _
    $region17: #{tpu_custom_call.1} parent=1 // pred_fallthru
      _
    // Predicated region
    $region18: #{tpu_custom_call.1} parent=1 // pred_check
      _
    $region19: #{tpu_custom_call.1} parent=1 // pred_check_branch
      %21 = sbr.rel (0) target = $region21
    $region20: #{tpu_custom_call.1} parent=1 // pred_region
      _
    $region21: #{tpu_custom_call.1} parent=1 // pred_fallthru
      _
    // Predicated region
    $region22: #{tpu_custom_call.1} parent=1 // pred_check
      _
    $region23: #{tpu_custom_call.1} parent=1 // pred_check_branch
      %23 = sbr.rel (0) target = $region25
    $region24: #{tpu_custom_call.1} parent=1 // pred_region
      _
    $region25: #{tpu_custom_call.1} parent=1 // pred_fallthru
      _
    %v25 = vld [vmem:[%s0] sm:$0xff]
    %v26 = vld [vmem:[%s0 + $0x8] sm:$0xff]
    %v27 = vld [vmem:[%s0 + $0x10] sm:$0xff]
    %v28 = vld [vmem:[%s0 + $0x18] sm:$0xff]
    %v29 = vld [vmem:[%s0 + $0x20] sm:$0xff]
    %v30 = vld [vmem:[%s0 + $0x28] sm:$0xff]
    %v31 = vld [vmem:[%s0 + $0x30] sm:$0xff]
    %v32 = vld [vmem:[%s0 + $0x38] sm:$0xff]
    %v33 = vld [vmem:[%s0 + $0x40] sm:$0xff]
    %v34 = vld [vmem:[%s0 + $0x48] sm:$0xff]
    %v35 = vld [vmem:[%s0 + $0x50] sm:$0xff]
    %v36 = vld [vmem:[%s0 + $0x58] sm:$0xff]
    %v37 = vld [vmem:[%s0 + $0x60] sm:$0xff]
    %v38 = vld [vmem:[%s0 + $0x68] sm:$0xff]
    %v39 = vld [vmem:[%s0 + $0x70] sm:$0xff]
    %v40 = vld [vmem:[%s0 + $0x78] sm:$0xff]
    %v41 = vld [vmem:[%s1] sm:$0xff]
    %v42 = vld [vmem:[%s1 + $0x8] sm:$0xff]
    %v43 = vld [vmem:[%s1 + $0x10] sm:$0xff]
    %v44 = vld [vmem:[%s1 + $0x18] sm:$0xff]
    %v45 = vld [vmem:[%s1 + $0x20] sm:$0xff]
    %v46 = vld [vmem:[%s1 + $0x28] sm:$0xff]
    %v47 = vld [vmem:[%s1 + $0x30] sm:$0xff]
    %v48 = vld [vmem:[%s1 + $0x38] sm:$0xff]
    %v49 = vld [vmem:[%s1 + $0x40] sm:$0xff]
    %v50 = vld [vmem:[%s1 + $0x48] sm:$0xff]
    %v51 = vld [vmem:[%s1 + $0x50] sm:$0xff]
    %v52 = vld [vmem:[%s1 + $0x58] sm:$0xff]
    %v53 = vld [vmem:[%s1 + $0x60] sm:$0xff]
    %v54 = vld [vmem:[%s1 + $0x68] sm:$0xff]
    %v55 = vld [vmem:[%s1 + $0x70] sm:$0xff]
    %v56 = vld [vmem:[%s1 + $0x78] sm:$0xff]
    %v57 = vld [vmem:[%s5] sm:$0xff]
    %v58 = vld [vmem:[%s5 + $0x8] sm:$0xff]
    %v59 = vld [vmem:[%s5 + $0x10] sm:$0xff]
    %v60 = vld [vmem:[%s5 + $0x18] sm:$0xff]
    %v61 = vld [vmem:[%s5 + $0x20] sm:$0xff]
    %v62 = vld [vmem:[%s5 + $0x28] sm:$0xff]
    %v63 = vld [vmem:[%s5 + $0x30] sm:$0xff]
    %v64 = vld [vmem:[%s5 + $0x38] sm:$0xff]
    %v65 = vld [vmem:[%s5 + $0x40] sm:$0xff]
    %v66 = vld [vmem:[%s5 + $0x48] sm:$0xff]
    %v67 = vld [vmem:[%s5 + $0x50] sm:$0xff]
    %v68 = vld [vmem:[%s5 + $0x58] sm:$0xff]
    %v69 = vld [vmem:[%s5 + $0x60] sm:$0xff]
    %v70 = vld [vmem:[%s5 + $0x68] sm:$0xff]
    %v71 = vld [vmem:[%s5 + $0x70] sm:$0xff]
    %v72 = vld [vmem:[%s5 + $0x78] sm:$0xff]
    %74 = vset.pattern.permute.xlu0 0
    %75 = vperm.xlu0 %74, %v57
    %v76 = vpop.permute.xlu0 %75
    %79 = vset.pattern.permute.xlu0 0
    %80 = vperm.xlu0 %79, %v58
    %v81 = vpop.permute.xlu0 %80
    %84 = vset.pattern.permute.xlu0 0
    %85 = vperm.xlu0 %84, %v59
    %v86 = vpop.permute.xlu0 %85
    %89 = vset.pattern.permute.xlu0 0
    %90 = vperm.xlu0 %89, %v60
    %v91 = vpop.permute.xlu0 %90
    %94 = vset.pattern.permute.xlu0 0
    %95 = vperm.xlu0 %94, %v61
    %v96 = vpop.permute.xlu0 %95
    %99 = vset.pattern.permute.xlu0 0
    %100 = vperm.xlu0 %99, %v62
    %v101 = vpop.permute.xlu0 %100
    %104 = vset.pattern.permute.xlu0 0
    %105 = vperm.xlu0 %104, %v63
    %v106 = vpop.permute.xlu0 %105
    %109 = vset.pattern.permute.xlu0 0
    %110 = vperm.xlu0 %109, %v64
    %v111 = vpop.permute.xlu0 %110
    %114 = vset.pattern.permute.xlu0 0
    %115 = vperm.xlu0 %114, %v65
    %v116 = vpop.permute.xlu0 %115
    %119 = vset.pattern.permute.xlu0 0
    %120 = vperm.xlu0 %119, %v66
    %v121 = vpop.permute.xlu0 %120
    %124 = vset.pattern.permute.xlu0 0
    %125 = vperm.xlu0 %124, %v67
    %v126 = vpop.permute.xlu0 %125
    %129 = vset.pattern.permute.xlu0 0
    %130 = vperm.xlu0 %129, %v68
    %v131 = vpop.permute.xlu0 %130
    %134 = vset.pattern.permute.xlu0 0
    %135 = vperm.xlu0 %134, %v69
    %v136 = vpop.permute.xlu0 %135
    %139 = vset.pattern.permute.xlu0 0
    %140 = vperm.xlu0 %139, %v70
    %v141 = vpop.permute.xlu0 %140
    %144 = vset.pattern.permute.xlu0 0
    %145 = vperm.xlu0 %144, %v71
    %v146 = vpop.permute.xlu0 %145
    %149 = vset.pattern.permute.xlu0 0
    %150 = vperm.xlu0 %149, %v72
    %v151 = vpop.permute.xlu0 %150
    %vm153 = vcmask 261120
    %v155 = vsel %vm153, %v41, 0
    %v158 = vsel %vm153, %v42, 0
    %v161 = vsel %vm153, %v43, 0
    %v164 = vsel %vm153, %v44, 0
    %v167 = vsel %vm153, %v45, 0
    %v170 = vsel %vm153, %v46, 0
    %v173 = vsel %vm153, %v47, 0
    %v176 = vsel %vm153, %v48, 0
    %v179 = vsel %vm153, %v49, 0
    %v182 = vsel %vm153, %v50, 0
    %v185 = vsel %vm153, %v51, 0
    %v188 = vsel %vm153, %v52, 0
    %v191 = vsel %vm153, %v53, 0
    %v194 = vsel %vm153, %v54, 0
    %v197 = vsel %vm153, %v55, 0
    %v200 = vsel %vm153, %v56, 0
    %v203 = vsel %vm153, %v25, 0
    %v206 = vsel %vm153, %v26, 0
    %v209 = vsel %vm153, %v27, 0
    %v212 = vsel %vm153, %v28, 0
    %v215 = vsel %vm153, %v29, 0
    %v218 = vsel %vm153, %v30, 0
    %v221 = vsel %vm153, %v31, 0
    %v224 = vsel %vm153, %v32, 0
    %v227 = vsel %vm153, %v33, 0
    %v230 = vsel %vm153, %v34, 0
    %v233 = vsel %vm153, %v35, 0
    %v236 = vsel %vm153, %v36, 0
    %v239 = vsel %vm153, %v37, 0
    %v242 = vsel %vm153, %v38, 0
    %v245 = vsel %vm153, %v39, 0
    %v248 = vsel %vm153, %v40, 0
    %250 = vmatprep.subr.mxu0 0.0
    %251 = vmatpush1.xpose.msra.mxu0 %v248
    %252 = vmatprep.subr.mxu0 0.0
    %253 = vmatpush1.xpose.msra.mxu0 %v245
    %254 = vmatprep.subr.mxu0 0.0
    %255 = vmatpush1.xpose.msra.mxu0 %v242
    %256 = vmatprep.subr.mxu0 0.0
    %257 = vmatpush1.xpose.msra.mxu0 %v239
    %258 = vmatprep.subr.mxu0 0.0
    %259 = vmatpush1.xpose.msra.mxu0 %v236
    %260 = vmatprep.subr.mxu0 0.0
    %261 = vmatpush1.xpose.msra.mxu0 %v233
    %262 = vmatprep.subr.mxu0 0.0
    %263 = vmatpush1.xpose.msra.mxu0 %v230
    %264 = vmatprep.subr.mxu0 0.0
    %265 = vmatpush1.xpose.msra.mxu0 %v227
    %266 = vmatprep.subr.mxu0 0.0
    %267 = vmatpush1.xpose.msra.mxu0 %v224
    %268 = vmatprep.subr.mxu0 0.0
    %269 = vmatpush1.xpose.msra.mxu0 %v221
    %270 = vmatprep.subr.mxu0 0.0
    %271 = vmatpush1.xpose.msra.mxu0 %v218
    %272 = vmatprep.subr.mxu0 0.0
    %273 = vmatpush1.xpose.msra.mxu0 %v215
    %274 = vmatprep.subr.mxu0 0.0
    %275 = vmatpush1.xpose.msra.mxu0 %v212
    %276 = vmatprep.subr.mxu0 0.0
    %277 = vmatpush1.xpose.msra.mxu0 %v209
    %278 = vmatprep.subr.mxu0 0.0
    %279 = vmatpush1.xpose.msra.mxu0 %v206
    %280 = vmatprep.subr.mxu0 0.0
    %281 = vmatpush1.xpose.msra.mxu0 %v203
    %282 = vmatprep.subr.mxu0 0.0
    %283 = vmatpush2.xpose.msra.mxu0 0.0
    %284 = vmatprep.subr.mxu0 0.0
    %285 = vmatpush2.xpose.msra.mxu0 0.0
    %286 = vmatprep.subr.mxu0 0.0
    %287 = vmatpush2.xpose.msra.mxu0 0.0
    %288 = vmatprep.subr.mxu0 0.0
    %289 = vmatpush2.xpose.msra.mxu0 0.0
    %290 = vmatprep.subr.mxu0 0.0
    %291 = vmatpush2.xpose.msra.mxu0 0.0
    %292 = vmatprep.subr.mxu0 0.0
    %293 = vmatpush2.xpose.msra.mxu0 0.0
    %294 = vmatprep.subr.mxu0 0.0
    %295 = vmatpush2.xpose.msra.mxu0 0.0
    %296 = vmatprep.subr.mxu0 0.0
    %297 = vmatpush2.xpose.msra.mxu0 0.0
    %298 = vmatprep.subr.mxu0 0.0
    %299 = vmatpush2.xpose.msra.mxu0 0.0
    %300 = vmatprep.subr.mxu0 0.0
    %301 = vmatpush2.xpose.msra.mxu0 0.0
    %302 = vmatprep.subr.mxu0 0.0
    %303 = vmatpush2.xpose.msra.mxu0 0.0
    %304 = vmatprep.subr.mxu0 0.0
    %305 = vmatpush2.xpose.msra.mxu0 0.0
    %306 = vmatprep.subr.mxu0 0.0
    %307 = vmatpush2.xpose.msra.mxu0 0.0
    %308 = vmatprep.subr.mxu0 0.0
    %309 = vmatpush2.xpose.msra.mxu0 0.0
    %310 = vmatprep.subr.mxu0 0.0
    %311 = vmatpush2.xpose.msra.mxu0 0.0
    %312 = vmatprep.subr.mxu0 0.0
    %313 = vmatpush2.xpose.msra.mxu0 0.0
    %314 = vmatprep.mubr.f32.mxu0 0.0
    %315 = vmatmul.mubr.f32.gmra.mxu0 %v155
    %v316 = vpop.f32.mrf.mxu0
    %v317 = vadd.f32 %v76, %v316
    %v318 = vpop.f32.mrf.mxu0
    %319 = vmatprep.mubr.f32.mxu0 0.0
    %320 = vmatmul.mubr.f32.gmra.mxu0 %v158
    %v321 = vpop.f32.mrf.mxu0
    %v322 = vadd.f32 %v81, %v321
    %v323 = vpop.f32.mrf.mxu0
    %324 = vmatprep.mubr.f32.mxu0 0.0
    %325 = vmatmul.mubr.f32.gmra.mxu0 %v161
    %v326 = vpop.f32.mrf.mxu0
    %v327 = vadd.f32 %v86, %v326
    %v328 = vpop.f32.mrf.mxu0
    %329 = vmatprep.mubr.f32.mxu0 0.0
    %330 = vmatmul.mubr.f32.gmra.mxu0 %v164
    %v331 = vpop.f32.mrf.mxu0
    %v332 = vadd.f32 %v91, %v331
    %v333 = vpop.f32.mrf.mxu0
    %334 = vmatprep.mubr.f32.mxu0 0.0
    %335 = vmatmul.mubr.f32.gmra.mxu0 %v167
    %v336 = vpop.f32.mrf.mxu0
    %v337 = vadd.f32 %v96, %v336
    %v338 = vpop.f32.mrf.mxu0
    %339 = vmatprep.mubr.f32.mxu0 0.0
    %340 = vmatmul.mubr.f32.gmra.mxu0 %v170
    %v341 = vpop.f32.mrf.mxu0
    %v342 = vadd.f32 %v101, %v341
    %v343 = vpop.f32.mrf.mxu0
    %344 = vmatprep.mubr.f32.mxu0 0.0
    %345 = vmatmul.mubr.f32.gmra.mxu0 %v173
    %v346 = vpop.f32.mrf.mxu0
    %v347 = vadd.f32 %v106, %v346
    %v348 = vpop.f32.mrf.mxu0
    %349 = vmatprep.mubr.f32.mxu0 0.0
    %350 = vmatmul.mubr.f32.gmra.mxu0 %v176
    %v351 = vpop.f32.mrf.mxu0
    %v352 = vadd.f32 %v111, %v351
    %v353 = vpop.f32.mrf.mxu0
    %354 = vmatprep.mubr.f32.mxu0 0.0
    %355 = vmatmul.mubr.f32.gmra.mxu0 %v179
    %v356 = vpop.f32.mrf.mxu0
    %v357 = vadd.f32 %v116, %v356
    %v358 = vpop.f32.mrf.mxu0
    %359 = vmatprep.mubr.f32.mxu0 0.0
    %360 = vmatmul.mubr.f32.gmra.mxu0 %v182
    %v361 = vpop.f32.mrf.mxu0
    %v362 = vadd.f32 %v121, %v361
    %v363 = vpop.f32.mrf.mxu0
    %364 = vmatprep.mubr.f32.mxu0 0.0
    %365 = vmatmul.mubr.f32.gmra.mxu0 %v185
    %v366 = vpop.f32.mrf.mxu0
    %v367 = vadd.f32 %v126, %v366
    %v368 = vpop.f32.mrf.mxu0
    %369 = vmatprep.mubr.f32.mxu0 0.0
    %370 = vmatmul.mubr.f32.gmra.mxu0 %v188
    %v371 = vpop.f32.mrf.mxu0
    %v372 = vadd.f32 %v131, %v371
    %v373 = vpop.f32.mrf.mxu0
    %374 = vmatprep.mubr.f32.mxu0 0.0
    %375 = vmatmul.mubr.f32.gmra.mxu0 %v191
    %v376 = vpop.f32.mrf.mxu0
    %v377 = vadd.f32 %v136, %v376
    %v378 = vpop.f32.mrf.mxu0
    %379 = vmatprep.mubr.f32.mxu0 0.0
    %380 = vmatmul.mubr.f32.gmra.mxu0 %v194
    %v381 = vpop.f32.mrf.mxu0
    %v382 = vadd.f32 %v141, %v381
    %v383 = vpop.f32.mrf.mxu0
    %384 = vmatprep.mubr.f32.mxu0 0.0
    %385 = vmatmul.mubr.f32.gmra.mxu0 %v197
    %v386 = vpop.f32.mrf.mxu0
    %v387 = vadd.f32 %v146, %v386
    %v388 = vpop.f32.mrf.mxu0
    %389 = vmatprep.mubr.f32.mxu0 0.0
    %390 = vmatmul.mubr.f32.gmra.mxu0 %v200
    %v391 = vpop.f32.mrf.mxu0
    %v392 = vadd.f32 %v151, %v391
    %v393 = vpop.f32.mrf.mxu0
    %394 = vdwg.mxu0
    %v395 = vmax.f32 %v317, 0.0
    %v396 = vmax.f32 %v322, 0.0
    %v397 = vmax.f32 %v327, 0.0
    %v398 = vmax.f32 %v332, 0.0
    %v399 = vmax.f32 %v337, 0.0
    %v400 = vmax.f32 %v342, 0.0
    %v401 = vmax.f32 %v347, 0.0
    %v402 = vmax.f32 %v352, 0.0
    %v403 = vmax.f32 %v357, 0.0
    %v404 = vmax.f32 %v362, 0.0
    %v405 = vmax.f32 %v367, 0.0
    %v406 = vmax.f32 %v372, 0.0
    %v407 = vmax.f32 %v377, 0.0
    %v408 = vmax.f32 %v382, 0.0
    %v409 = vmax.f32 %v387, 0.0
    %v410 = vmax.f32 %v392, 0.0
    %v411 = vpack.c.bf16 %v396, %v395
    %v412 = vpack.c.bf16 %v398, %v397
    %v413 = vpack.c.bf16 %v400, %v399
    %v414 = vpack.c.bf16 %v402, %v401
    %v415 = vpack.c.bf16 %v404, %v403
    %v416 = vpack.c.bf16 %v406, %v405
    %v417 = vpack.c.bf16 %v408, %v407
    %v418 = vpack.c.bf16 %v410, %v409
    %v419 = vld [vmem:[%s2] sm:$0xf]
    %v420 = vld [vmem:[%s2 + $0x4] sm:$0xf]
    %v421 = vld [vmem:[%s2 + $0x8] sm:$0xf]
    %v422 = vld [vmem:[%s2 + $0xc] sm:$0xf]
    %v423 = vld [vmem:[%s2 + $0x10] sm:$0xf]
    %v424 = vld [vmem:[%s2 + $0x14] sm:$0xf]
    %v425 = vld [vmem:[%s2 + $0x18] sm:$0xf]
    %v426 = vld [vmem:[%s2 + $0x1c] sm:$0xf]
    %v427 = vld [vmem:[%s5 + $0x80] sm:$0xff]
    %v428 = vld [vmem:[%s5 + $0x88] sm:$0xff]
    %v429 = vld [vmem:[%s5 + $0x90] sm:$0xff]
    %v430 = vld [vmem:[%s5 + $0x98] sm:$0xff]
    %v431 = vld [vmem:[%s5 + $0xa0] sm:$0xff]
    %v432 = vld [vmem:[%s5 + $0xa8] sm:$0xff]
    %v433 = vld [vmem:[%s5 + $0xb0] sm:$0xff]
    %v434 = vld [vmem:[%s5 + $0xb8] sm:$0xff]
    %436 = vset.pattern.permute.xlu0 0
    %437 = vperm.xlu0 %436, %v427
    %v438 = vpop.permute.xlu0 %437
    %441 = vset.pattern.permute.xlu0 0
    %442 = vperm.xlu0 %441, %v428
    %v443 = vpop.permute.xlu0 %442
    %446 = vset.pattern.permute.xlu0 0
    %447 = vperm.xlu0 %446, %v429
    %v448 = vpop.permute.xlu0 %447
    %451 = vset.pattern.permute.xlu0 0
    %452 = vperm.xlu0 %451, %v430
    %v453 = vpop.permute.xlu0 %452
    %456 = vset.pattern.permute.xlu0 0
    %457 = vperm.xlu0 %456, %v431
    %v458 = vpop.permute.xlu0 %457
    %461 = vset.pattern.permute.xlu0 0
    %462 = vperm.xlu0 %461, %v432
    %v463 = vpop.permute.xlu0 %462
    %466 = vset.pattern.permute.xlu0 0
    %467 = vperm.xlu0 %466, %v433
    %v468 = vpop.permute.xlu0 %467
    %471 = vset.pattern.permute.xlu0 0
    %472 = vperm.xlu0 %471, %v434
    %v473 = vpop.permute.xlu0 %472
    %v483 = vunpack.c.l.b16 %v419
    %v484 = vunpack.c.l.b16 %v420
    %v485 = vunpack.c.l.b16 %v421
    %v486 = vunpack.c.l.b16 %v422
    %v487 = vunpack.c.l.b16 %v423
    %v488 = vunpack.c.l.b16 %v424
    %v489 = vunpack.c.l.b16 %v425
    %v490 = vunpack.c.l.b16 %v426
    %v491 = vpack.c.b16 %v484, %v483
    %v492 = vpack.c.b16 %v486, %v485
    %v493 = vpack.c.b16 %v488, %v487
    %v494 = vpack.c.b16 %v490, %v489
    %499 = vmatprep.subr.bf16.mxu0 0
    %500 = vmatpush1.bf16.msra.mxu0 %v418
    %501 = vmatprep.subr.bf16.mxu0 0
    %502 = vmatpush1.bf16.msra.mxu0 %v417
    %503 = vmatprep.subr.bf16.mxu0 0
    %504 = vmatpush1.bf16.msra.mxu0 %v416
    %505 = vmatprep.subr.bf16.mxu0 0
    %506 = vmatpush1.bf16.msra.mxu0 %v415
    %507 = vmatprep.subr.bf16.mxu0 0
    %508 = vmatpush1.bf16.msra.mxu0 %v414
    %509 = vmatprep.subr.bf16.mxu0 0
    %510 = vmatpush1.bf16.msra.mxu0 %v413
    %511 = vmatprep.subr.bf16.mxu0 0
    %512 = vmatpush1.bf16.msra.mxu0 %v412
    %513 = vmatprep.subr.bf16.mxu0 0
    %514 = vmatpush1.bf16.msra.mxu0 %v411
    %515 = vmatprep.subr.bf16.mxu0 0
    %516 = vmatpush2.bf16.msra.mxu0 0
    %517 = vmatprep.subr.bf16.mxu0 0
    %518 = vmatpush2.bf16.msra.mxu0 0
    %519 = vmatprep.subr.bf16.mxu0 0
    %520 = vmatpush2.bf16.msra.mxu0 0
    %521 = vmatprep.subr.bf16.mxu0 0
    %522 = vmatpush2.bf16.msra.mxu0 0
    %523 = vmatprep.subr.bf16.mxu0 0
    %524 = vmatpush2.bf16.msra.mxu0 0
    %525 = vmatprep.subr.bf16.mxu0 0
    %526 = vmatpush2.bf16.msra.mxu0 0
    %527 = vmatprep.subr.bf16.mxu0 0
    %528 = vmatpush2.bf16.msra.mxu0 0
    %529 = vmatprep.subr.bf16.mxu0 0
    %530 = vmatpush2.bf16.msra.mxu0 0
    %531 = vmatprep.mubr.bf16.mxu0 0
    %532 = vmatmul.mubr.bf16.gmra.mxu0 %v491
    %v533 = vpop.f32.mrf.mxu0
    %v534 = vadd.f32 %v438, %v533
    %v535 = vpop.f32.mrf.mxu0
    %v536 = vpop.f32.mrf.mxu0
    %v537 = vadd.f32 %v443, %v536
    %v538 = vpop.f32.mrf.mxu0
    %539 = vmatprep.mubr.bf16.mxu0 0
    %540 = vmatmul.mubr.bf16.gmra.mxu0 %v492
    %v541 = vpop.f32.mrf.mxu0
    %v542 = vadd.f32 %v448, %v541
    %v543 = vpop.f32.mrf.mxu0
    %v544 = vpop.f32.mrf.mxu0
    %v545 = vadd.f32 %v453, %v544
    %v546 = vpop.f32.mrf.mxu0
    %547 = vmatprep.mubr.bf16.mxu0 0
    %548 = vmatmul.mubr.bf16.gmra.mxu0 %v493
    %v549 = vpop.f32.mrf.mxu0
    %v550 = vadd.f32 %v458, %v549
    %v551 = vpop.f32.mrf.mxu0
    %v552 = vpop.f32.mrf.mxu0
    %v553 = vadd.f32 %v463, %v552
    %v554 = vpop.f32.mrf.mxu0
    %555 = vmatprep.mubr.bf16.mxu0 0
    %556 = vmatmul.mubr.bf16.gmra.mxu0 %v494
    %v557 = vpop.f32.mrf.mxu0
    %v558 = vadd.f32 %v468, %v557
    %v559 = vpop.f32.mrf.mxu0
    %v560 = vpop.f32.mrf.mxu0
    %v561 = vadd.f32 %v473, %v560
    %v562 = vpop.f32.mrf.mxu0
    %563 = vdwg.mxu0
    %v564 = vmax.f32 %v534, 0.0
    %v565 = vmax.f32 %v537, 0.0
    %v566 = vmax.f32 %v542, 0.0
    %v567 = vmax.f32 %v545, 0.0
    %v568 = vmax.f32 %v550, 0.0
    %v569 = vmax.f32 %v553, 0.0
    %v570 = vmax.f32 %v558, 0.0
    %v571 = vmax.f32 %v561, 0.0
    %v572 = vpack.c.bf16 %v565, %v564
    %v573 = vpack.c.bf16 %v567, %v566
    %v574 = vpack.c.bf16 %v569, %v568
    %v575 = vpack.c.bf16 %v571, %v570
    %v576 = vld [vmem:[%s3] sm:$0xf]
    %v577 = vld [vmem:[%s3 + $0x4] sm:$0xf]
    %v578 = vld [vmem:[%s3 + $0x8] sm:$0xf]
    %v579 = vld [vmem:[%s3 + $0xc] sm:$0xf]
    %v580 = vld [vmem:[%s5 + $0xc0] sm:$0xff]
    %v581 = vld [vmem:[%s5 + $0xc8] sm:$0xff]
    %v582 = vld [vmem:[%s5 + $0xd0] sm:$0xff]
    %v583 = vld [vmem:[%s5 + $0xd8] sm:$0xff]
    %585 = vset.pattern.permute.xlu0 0
    %586 = vperm.xlu0 %585, %v580
    %v587 = vpop.permute.xlu0 %586
    %590 = vset.pattern.permute.xlu0 0
    %591 = vperm.xlu0 %590, %v581
    %v592 = vpop.permute.xlu0 %591
    %595 = vset.pattern.permute.xlu0 0
    %596 = vperm.xlu0 %595, %v582
    %v597 = vpop.permute.xlu0 %596
    %600 = vset.pattern.permute.xlu0 0
    %601 = vperm.xlu0 %600, %v583
    %v602 = vpop.permute.xlu0 %601
    %v608 = vunpack.c.l.b16 %v576
    %v609 = vunpack.c.l.b16 %v577
    %v610 = vunpack.c.l.b16 %v578
    %v611 = vunpack.c.l.b16 %v579
    %v612 = vpack.c.b16 %v609, %v608
    %v613 = vpack.c.b16 %v611, %v610
    %vm614 = vcmask 523264
    %v616 = vsel %vm614, %v612, 0
    %v619 = vsel %vm614, %v613, 0
    %621 = vmatprep.subr.bf16.mxu0 0
    %622 = vmatpush1.bf16.msra.mxu0 0
    %623 = vmatprep.subr.bf16.mxu0 0
    %624 = vmatpush1.bf16.msra.mxu0 0
    %625 = vmatprep.subr.bf16.mxu0 0
    %626 = vmatpush1.bf16.msra.mxu0 0
    %627 = vmatprep.subr.bf16.mxu0 0
    %628 = vmatpush1.bf16.msra.mxu0 0
    %629 = vmatprep.subr.bf16.mxu0 0
    %630 = vmatpush1.bf16.msra.mxu0 %v575
    %631 = vmatprep.subr.bf16.mxu0 0
    %632 = vmatpush1.bf16.msra.mxu0 %v574
    %633 = vmatprep.subr.bf16.mxu0 0
    %634 = vmatpush1.bf16.msra.mxu0 %v573
    %635 = vmatprep.subr.bf16.mxu0 0
    %636 = vmatpush1.bf16.msra.mxu0 %v572
    %637 = vmatprep.subr.bf16.mxu0 0
    %638 = vmatpush2.bf16.msra.mxu0 0
    %639 = vmatprep.subr.bf16.mxu0 0
    %640 = vmatpush2.bf16.msra.mxu0 0
    %641 = vmatprep.subr.bf16.mxu0 0
    %642 = vmatpush2.bf16.msra.mxu0 0
    %643 = vmatprep.subr.bf16.mxu0 0
    %644 = vmatpush2.bf16.msra.mxu0 0
    %645 = vmatprep.subr.bf16.mxu0 0
    %646 = vmatpush2.bf16.msra.mxu0 0
    %647 = vmatprep.subr.bf16.mxu0 0
    %648 = vmatpush2.bf16.msra.mxu0 0
    %649 = vmatprep.subr.bf16.mxu0 0
    %650 = vmatpush2.bf16.msra.mxu0 0
    %651 = vmatprep.subr.bf16.mxu0 0
    %652 = vmatpush2.bf16.msra.mxu0 0
    %653 = vmatprep.mubr.bf16.mxu0 0
    %654 = vmatmul.mubr.bf16.gmra.mxu0 %v616
    %v655 = vpop.f32.mrf.mxu0
    %v656 = vadd.f32 %v587, %v655
    %v657 = vpop.f32.mrf.mxu0
    %v658 = vpop.f32.mrf.mxu0
    %v659 = vadd.f32 %v592, %v658
    %v660 = vpop.f32.mrf.mxu0
    %661 = vmatprep.mubr.bf16.mxu0 0
    %662 = vmatmul.mubr.bf16.gmra.mxu0 %v619
    %v663 = vpop.f32.mrf.mxu0
    %v664 = vadd.f32 %v597, %v663
    %v665 = vpop.f32.mrf.mxu0
    %v666 = vpop.f32.mrf.mxu0
    %v667 = vadd.f32 %v602, %v666
    %v668 = vpop.f32.mrf.mxu0
    %669 = vdwg.mxu0
    %v670 = vmax.f32 %v656, 0.0
    %v671 = vmax.f32 %v659, 0.0
    %v672 = vmax.f32 %v664, 0.0
    %v673 = vmax.f32 %v667, 0.0
    %v674 = vld [vmem:[%s4] sm:$0xff]
    %v675 = vld [vmem:[%s4 + $0x8] sm:$0xff]
    %v676 = vld [vmem:[%s4 + $0x10] sm:$0xff]
    %v677 = vld [vmem:[%s4 + $0x18] sm:$0xff]
    %679 = vset.pattern.permute.xlu0 0
    %680 = vperm.xlu0 %679, %v674
    %v681 = vpop.permute.xlu0 %680
    %684 = vset.pattern.permute.xlu0 0
    %685 = vperm.xlu0 %684, %v675
    %v686 = vpop.permute.xlu0 %685
    %689 = vset.pattern.permute.xlu0 0
    %690 = vperm.xlu0 %689, %v676
    %v691 = vpop.permute.xlu0 %690
    %694 = vset.pattern.permute.xlu0 0
    %695 = vperm.xlu0 %694, %v677
    %v696 = vpop.permute.xlu0 %695
    %v698 = vmul.f32 %v670, %v681
    %v699 = vmul.f32 %v671, %v686
    %v700 = vmul.f32 %v672, %v691
    %v701 = vmul.f32 %v673, %v696
    %v702 = vadd.f32 %v698, %v699
    %v703 = vadd.f32 %v702, %v700
    %v704 = vadd.f32 %v703, %v701
    %v705 = vrot.slane %v704, 4
    %v706 = vadd.f32 %v704, %v705
    %v707 = vrot.slane %v706, 2
    %v708 = vadd.f32 %v706, %v707
    %v709 = vrot.slane %v708, 1
    %v710 = vadd.f32 %v708, %v709
    %v711 = vld [vmem:[%s5 + $0xe0] sm:$0x1]
    %713 = vset.pattern.permute.xlu0 0
    %714 = vperm.xlu0 %713, %v711
    %v715 = vpop.permute.xlu0 %714
    %v717 = vadd.f32 %v710, %v715
    %718 = vst [vmem:[#allocation2] sm:$0x1] %v717
    // Predicated region
    $region26: #{tpu_custom_call.1} parent=1 // pred_check
      _
    $region27: #{tpu_custom_call.1} parent=1 // pred_check_branch
      %720 = sbr.rel (0) target = $region29
    $region28: #{tpu_custom_call.1} parent=1 // pred_region
      %s722 = ssub.s32 16, 16
      %723 = vsyncadd [#allocation3], %s722
      %s725 = sshll.u32 [#allocation2], 4
      %s726 = int_to_ptr.vmem [resolvable:$true] %s725
      %728 = dma.vmem_to_hbm [thread:$0]  %s726, 16, %s6, [#allocation3]
    $region29: #{tpu_custom_call.1} parent=1 // pred_fallthru
      _
    // Predicated region
    $region30: #{tpu_custom_call.1} parent=1 // pred_check
      _
    $region31: #{tpu_custom_call.1} parent=1 // pred_check_branch
      %730 = sbr.rel (0) target = $region33
    $region32: #{tpu_custom_call.1} parent=1 // pred_region
      %731 = dma.done [#allocation3], 16
    $region33: #{tpu_custom_call.1} parent=1 // pred_fallthru
      _
    %732 = vsyncpa [#allocation3], 1

</llo_original>
